<compile_context>
chip_gen: v7x
topology: tpu7x:2x2x1
jax: 0.10.0
libtpu: 0.0.40
codegen_flags: <defaults>
</compile_context>

<pallas_src>
import functools

import jax
import jax.numpy as jnp
from jax.experimental import pallas as pl
from jax.experimental.pallas import tpu as pltpu


def gmu_kernel(x_ref, watt_ref, w1_ref, b1_ref, w2_ref, b2_ref, out_ref):
    # x block: [TB, M, D] in the input dtype (f32 or bf16). Cast once; compute in f32
    # everywhere so the same kernel lowers on v5e (no bf16 VPU/EUP) as well as v6e/v7x.
    xf = x_ref[...].astype(jnp.float32)            # [TB, M, D]

    w_att = watt_ref[...].astype(jnp.float32)      # [1, D]

    # Additive-attention scores: Linear(D -> 1), squeezed to [TB, M].
    # The scalar bias b_att is a constant shift of every score and cancels exactly under
    # softmax, so it is omitted (zero-risk micro-win per perf review).
    scores = jnp.sum(xf * w_att[0][None, None, :], axis=-1)       # [TB, M]

    # Numerically-stable softmax over the sequence axis.
    m = jnp.max(scores, axis=-1, keepdims=True)
    e = jnp.exp(scores - m)
    denom = jnp.sum(e, axis=-1, keepdims=True)
    attn = e * pl.reciprocal(denom, approx=True)                  # EUP vrcp; [TB, M]

    # usetanh=True gating, then weighted sum over the sequence axis.
    g = jnp.tanh(xf)                                              # [TB, M, D]
    ws = jnp.sum(g * attn[:, :, None], axis=1)                    # [TB, D] f32 accumulate

    # Classifier: Linear(64->64) -> LeakyReLU(0.01) -> Linear(64->C).
    w1 = w1_ref[...].astype(jnp.float32)                          # [D, H]
    b1 = b1_ref[...].astype(jnp.float32)                          # [1, H]
    w2 = w2_ref[...].astype(jnp.float32)                          # [H, C]
    b2 = b2_ref[...].astype(jnp.float32)                          # [1, C]

    h = jnp.dot(ws, w1, preferred_element_type=jnp.float32) + b1
    h = jnp.where(h > 0, h, 0.01 * h)
    logits = jnp.dot(h, w2, preferred_element_type=jnp.float32) + b2

    # C=2 -> masked lane store; negligible vs. x reads (would pad to 128 lanes only if the
    # epilogue ever showed up in a bundle dump).
    out_ref[...] = logits.astype(out_ref.dtype)


@functools.partial(jax.jit, static_argnames=("block_b", "vmem_limit_bytes"))
def gmu_forward(x, params, *, block_b=1024, vmem_limit_bytes=32 * 1024 * 1024):
    """Batch-tiled GMU forward. x: [B, M, D] (f32 or bf16). Returns f32 logits [B, C]."""
    B, M, D = x.shape
    H = params["w1"].shape[1]
    C = params["w2"].shape[1]

    # Per-row x footprint is M*D*dtype bytes (2 KiB at M=8, D=64, f32); block_b=1024 ->
    # 2 MiB per buffer, x2 for double-buffering, plus f32 temporaries: well under the
    # 32 MiB scoped limit and under v7x's 64 MiB physical VMEM per TensorCore.
    if B <= block_b:
        tb = B                      # single block covering the full batch
    else:
        tb = max(8, (block_b // 8) * 8)   # keep the sublane dim of 2-D temps aligned

    grid = (pl.cdiv(B, tb),)
    const2 = lambda i: (0, 0)       # weights: same block every step -> stay VMEM-resident

    return pl.pallas_call(
        gmu_kernel,
        out_shape=jax.ShapeDtypeStruct((B, C), jnp.float32),
        grid=grid,
        in_specs=[
            pl.BlockSpec((tb, M, D), lambda i: (i, 0, 0)),   # x: batch-tiled
            pl.BlockSpec((1, D), const2),                    # w_att
            pl.BlockSpec((D, H), const2),                    # w1
            pl.BlockSpec((1, H), const2),                    # b1
            pl.BlockSpec((H, C), const2),                    # w2
            pl.BlockSpec((1, C), const2),                    # b2
        ],
        out_specs=pl.BlockSpec((tb, C), lambda i: (i, 0)),
        compiler_params=pltpu.CompilerParams(
            dimension_semantics=("parallel",),               # v7x: shard batch over 2 TCs
            vmem_limit_bytes=vmem_limit_bytes,
        ),
    )(x, params["w_att"], params["w1"], params["b1"], params["w2"], params["b2"])


def init_params(key, d=64, interm=64, n_classes=2):
    # Deterministic init mimicking torch.nn.Linear defaults U[-1/sqrt(fan_in), 1/sqrt(fan_in)].
    ks = jax.random.split(key, 6)
    lim_att = 1.0 / jnp.sqrt(d)
    lim_1 = 1.0 / jnp.sqrt(d)
    lim_2 = 1.0 / jnp.sqrt(interm)
    return {
        "w_att": jax.random.uniform(ks[0], (1, d), jnp.float32, -lim_att, lim_att),
        "b_att": jax.random.uniform(ks[1], (1, 1), jnp.float32, -lim_att, lim_att),
        "w1": jax.random.uniform(ks[2], (d, interm), jnp.float32, -lim_1, lim_1),
        "b1": jax.random.uniform(ks[3], (1, interm), jnp.float32, -lim_1, lim_1),
        "w2": jax.random.uniform(ks[4], (interm, n_classes), jnp.float32, -lim_2, lim_2),
        "b2": jax.random.uniform(ks[5], (1, n_classes), jnp.float32, -lim_2, lim_2),
    }


def gmu_reference(x, p):
    # Pure-JAX reference matching the PyTorch forward (including the score bias).
    scores = jnp.einsum("bmd,d->bm", x, p["w_att"][0]) + p["b_att"][0, 0]
    attn = jax.nn.softmax(scores, axis=-1)
    ws = jnp.sum(jnp.tanh(x) * attn[:, :, None], axis=1)
    h = ws @ p["w1"] + p["b1"]
    h = jnp.where(h > 0, h, 0.01 * h)
    return h @ p["w2"] + p["b2"]


if __name__ == "__main__":
    key = jax.random.PRNGKey(0)
    k_x, k_p, k_x2 = jax.random.split(key, 3)

    B, M, D = 2, 8, 64          # module requires feature dim 64; multitask=False -> 2 classes
    x = jax.random.normal(k_x, (B, M, D), dtype=jnp.float32)
    params = init_params(k_p, d=D, interm=64, n_classes=2)

    out = jax.block_until_ready(gmu_forward(x, params))
    ref = gmu_reference(x, params)
    assert out.shape == (B, 2)
    assert jnp.allclose(out, ref, atol=5e-3, rtol=5e-3), (out, ref)

    # Exercise the batch grid (3 pipelined steps) and the reduced-HBM-traffic bf16 path.
    B2 = 48
    x2 = jax.random.normal(k_x2, (B2, M, D), dtype=jnp.float32).astype(jnp.bfloat16)
    out2 = jax.block_until_ready(gmu_forward(x2, params, block_b=16))
    ref2 = gmu_reference(x2.astype(jnp.float32), params)
    assert out2.shape == (B2, 2)
    assert jnp.allclose(out2, ref2, atol=1e-2, rtol=1e-2), (out2, ref2)

    print("KERNEL_OK")
</pallas_src>

<mosaic_0001>
module attributes {stable_mosaic.version = 11 : i64} {
  func.func @gmu_kernel(%arg0: i32, %arg1: memref<2x8x64xf32, #tpu.memory_space<vmem>>, %arg2: memref<1x64xf32, #tpu.memory_space<vmem>>, %arg3: memref<64x64xf32, #tpu.memory_space<vmem>>, %arg4: memref<1x64xf32, #tpu.memory_space<vmem>>, %arg5: memref<64x2xf32, #tpu.memory_space<vmem>>, %arg6: memref<1x2xf32, #tpu.memory_space<vmem>>, %arg7: memref<2x2xf32, #tpu.memory_space<vmem>>) attributes {dimension_semantics = [#tpu.dimension_semantics<parallel>], iteration_bounds = array<i64: 1>, scalar_prefetch = 0 : i64, scratch_operands = 0 : i64, tpu.core_type = #tpu.core_type<tc>, window_params = [{transform_indices = @transform_0, window_bounds = array<i64: 2, 8, 64>}, {pipeline_mode = #tpu.pipeline_mode<synchronous>, transform_indices = @transform_1, window_bounds = array<i64: 1, 64>}, {pipeline_mode = #tpu.pipeline_mode<synchronous>, transform_indices = @transform_2, window_bounds = array<i64: 64, 64>}, {pipeline_mode = #tpu.pipeline_mode<synchronous>, transform_indices = @transform_3, window_bounds = array<i64: 1, 64>}, {pipeline_mode = #tpu.pipeline_mode<synchronous>, transform_indices = @transform_4, window_bounds = array<i64: 64, 2>}, {pipeline_mode = #tpu.pipeline_mode<synchronous>, transform_indices = @transform_5, window_bounds = array<i64: 1, 2>}, {transform_indices = @transform_6, window_bounds = array<i64: 2, 2>}]} {
    %c0 = arith.constant 0 : index
    %c0_0 = arith.constant 0 : index
    %c0_1 = arith.constant 0 : index
    %0 = vector.load %arg1[%c0, %c0_0, %c0_1] : memref<2x8x64xf32, #tpu.memory_space<vmem>>, vector<2x8x64xf32>
    %c0_2 = arith.constant 0 : index
    %c0_3 = arith.constant 0 : index
    %1 = vector.load %arg2[%c0_2, %c0_3] : memref<1x64xf32, #tpu.memory_space<vmem>>, vector<1x64xf32>
    %2 = vector.shape_cast %1 : vector<1x64xf32> to vector<64xf32>
    %3 = vector.shape_cast %2 : vector<64xf32> to vector<1x1x64xf32>
    %4 = vector.broadcast %3 : vector<1x1x64xf32> to vector<2x8x64xf32>
    %5 = arith.mulf %0, %4 : vector<2x8x64xf32>
    %cst = arith.constant dense<0.000000e+00> : vector<2x8xf32>
    %6 = vector.multi_reduction <add>, %5, %cst [2] : vector<2x8x64xf32> to vector<2x8xf32>
    %cst_4 = arith.constant dense<0xFF800000> : vector<2xf32>
    %7 = vector.multi_reduction <maximumf>, %6, %cst_4 [1] : vector<2x8xf32> to vector<2xf32>
    %8 = vector.shape_cast %7 : vector<2xf32> to vector<2x1xf32>
    %9 = vector.broadcast %8 : vector<2x1xf32> to vector<2x8xf32>
    %10 = arith.subf %6, %9 : vector<2x8xf32>
    %11 = math.exp %10 : vector<2x8xf32>
    %cst_5 = arith.constant dense<0.000000e+00> : vector<2xf32>
    %12 = vector.multi_reduction <add>, %11, %cst_5 [1] : vector<2x8xf32> to vector<2xf32>
    %13 = vector.shape_cast %12 : vector<2xf32> to vector<2x1xf32>
    %14 = tpu.reciprocal %13 {approx = true} : vector<2x1xf32> -> vector<2x1xf32>
    %15 = vector.broadcast %14 : vector<2x1xf32> to vector<2x8xf32>
    %16 = arith.mulf %11, %15 : vector<2x8xf32>
    %17 = math.tanh %0 : vector<2x8x64xf32>
    %18 = vector.shape_cast %16 : vector<2x8xf32> to vector<2x8x1xf32>
    %19 = vector.broadcast %18 : vector<2x8x1xf32> to vector<2x8x64xf32>
    %20 = arith.mulf %17, %19 : vector<2x8x64xf32>
    %cst_6 = arith.constant dense<0.000000e+00> : vector<2x64xf32>
    %21 = vector.multi_reduction <add>, %20, %cst_6 [1] : vector<2x8x64xf32> to vector<2x64xf32>
    %c0_7 = arith.constant 0 : index
    %c0_8 = arith.constant 0 : index
    %22 = vector.load %arg3[%c0_7, %c0_8] : memref<64x64xf32, #tpu.memory_space<vmem>>, vector<64x64xf32>
    %c0_9 = arith.constant 0 : index
    %c0_10 = arith.constant 0 : index
    %23 = vector.load %arg4[%c0_9, %c0_10] : memref<1x64xf32, #tpu.memory_space<vmem>>, vector<1x64xf32>
    %c0_11 = arith.constant 0 : index
    %c0_12 = arith.constant 0 : index
    %24 = vector.load %arg5[%c0_11, %c0_12] : memref<64x2xf32, #tpu.memory_space<vmem>>, vector<64x2xf32>
    %c0_13 = arith.constant 0 : index
    %c0_14 = arith.constant 0 : index
    %25 = vector.load %arg6[%c0_13, %c0_14] : memref<1x2xf32, #tpu.memory_space<vmem>>, vector<1x2xf32>
    %cst_15 = arith.constant dense<0.000000e+00> : vector<2x64xf32>
    %26 = tpu.matmul %21, %22, %cst_15 {dimension_numbers = #tpu.dot_dimension_numbers<[1], [0], [0], [1], [0, 0, 1, 1], [], []>} : vector<2x64xf32>, vector<64x64xf32>, vector<2x64xf32> -> vector<2x64xf32>
    %27 = vector.broadcast %23 : vector<1x64xf32> to vector<2x64xf32>
    %28 = arith.addf %26, %27 : vector<2x64xf32>
    %cst_16 = arith.constant 0.000000e+00 : f32
    %29 = vector.broadcast %cst_16 : f32 to vector<2x64xf32>
    %30 = arith.cmpf ogt, %28, %29 : vector<2x64xf32>
    %cst_17 = arith.constant 0.00999999977 : f32
    %31 = vector.broadcast %cst_17 : f32 to vector<2x64xf32>
    %32 = arith.mulf %31, %28 : vector<2x64xf32>
    %33 = arith.select %30, %28, %32 : vector<2x64xi1>, vector<2x64xf32>
    %cst_18 = arith.constant dense<0.000000e+00> : vector<2x2xf32>
    %34 = tpu.matmul %33, %24, %cst_18 {dimension_numbers = #tpu.dot_dimension_numbers<[1], [0], [0], [1], [0, 0, 1, 1], [], []>} : vector<2x64xf32>, vector<64x2xf32>, vector<2x2xf32> -> vector<2x2xf32>
    %35 = vector.broadcast %25 : vector<1x2xf32> to vector<2x2xf32>
    %36 = arith.addf %34, %35 : vector<2x2xf32>
    %c0_19 = arith.constant 0 : index
    %c0_20 = arith.constant 0 : index
    %37 = vector.load %arg7[%c0_19, %c0_20] : memref<2x2xf32, #tpu.memory_space<vmem>>, vector<2x2xf32>
    tpu.vector_store %arg7[%c0_19, %c0_20], %36 {strides = array<i32>} : memref<2x2xf32, #tpu.memory_space<vmem>>, vector<2x2xf32>,
    return
  }
  func.func @transform_0(%arg0: i32) -> (i32, i32, i32) {
    %c0_i32 = arith.constant 0 : i32
    %c0_i32_0 = arith.constant 0 : i32
    %c0_i32_1 = arith.constant 0 : i32
    return %arg0, %c0_i32, %c0_i32_0 : i32, i32, i32
  }
  func.func @transform_1(%arg0: i32) -> (i32, i32) {
    %c0_i32 = arith.constant 0 : i32
    %c0_i32_0 = arith.constant 0 : i32
    %c0_i32_1 = arith.constant 0 : i32
    return %c0_i32, %c0_i32_0 : i32, i32
  }
  func.func @transform_2(%arg0: i32) -> (i32, i32) {
    %c0_i32 = arith.constant 0 : i32
    %c0_i32_0 = arith.constant 0 : i32
    %c0_i32_1 = arith.constant 0 : i32
    return %c0_i32, %c0_i32_0 : i32, i32
  }
  func.func @transform_3(%arg0: i32) -> (i32, i32) {
    %c0_i32 = arith.constant 0 : i32
    %c0_i32_0 = arith.constant 0 : i32
    %c0_i32_1 = arith.constant 0 : i32
    return %c0_i32, %c0_i32_0 : i32, i32
  }
  func.func @transform_4(%arg0: i32) -> (i32, i32) {
    %c0_i32 = arith.constant 0 : i32
    %c0_i32_0 = arith.constant 0 : i32
    %c0_i32_1 = arith.constant 0 : i32
    return %c0_i32, %c0_i32_0 : i32, i32
  }
  func.func @transform_5(%arg0: i32) -> (i32, i32) {
    %c0_i32 = arith.constant 0 : i32
    %c0_i32_0 = arith.constant 0 : i32
    %c0_i32_1 = arith.constant 0 : i32
    return %c0_i32, %c0_i32_0 : i32, i32
  }
  func.func @transform_6(%arg0: i32) -> (i32, i32) {
    %c0_i32 = arith.constant 0 : i32
    %c0_i32_0 = arith.constant 0 : i32
    return %arg0, %c0_i32 : i32, i32
  }
}

</mosaic_0001>

<llo_original>
// kernel: gmu_forward.1
$region0: #{gmu_forward.1}
  #allocation0 [shape = 'u32[]', space=smem, size = 0x4, offset = 0x4, fixed_abs, tag = 'smem constant byte address 0x4 - core index']
  #allocation1 [shape = 'u32[144,128]{1,0:T(1,128)}', space=vmem, size = 0x12000, scoped, tag = 'internal scratch']
  %s0 = inlined_call_operand.hbm [shape: f32[2,8,64], index: 0, kind: input, shape index: {}]
  %s1 = inlined_call_operand.vmem [shape: f32[1,64], index: 1, kind: input, shape index: {}]
  %s2 = inlined_call_operand.vmem [shape: f32[64,64], index: 2, kind: input, shape index: {}]
  %s3 = inlined_call_operand.vmem [shape: f32[1,64], index: 3, kind: input, shape index: {}]
  %s4 = inlined_call_operand.vmem [shape: f32[64,2], index: 4, kind: input, shape index: {}]
  %s5 = inlined_call_operand.vmem [shape: f32[1,2], index: 5, kind: input, shape index: {}]
  %s6 = inlined_call_operand.hbm [shape: f32[2,2], index: 6, kind: output, shape index: {}]
  %s7 = sld [smem:[#allocation0]]
  $region38: #{gmu_forward.1} parent=0
    _
  %s9 = ssub.s32 1, %s7
  %s10 = scalar_select 0, %s9, %s7
  $region1: #{gmu_forward.1} parent=0
    #allocation2 [shape = 'u8[8192]{0}', space=vmem, size = 0x2000, scoped, tag = 'input window, operand 0, single buffered']
    #allocation3 [shape = 's32[1]{0}', space=sflag, size = 0x4, scoped, tag = 'scoped memory for gmu_forward.1']
    #allocation4 [shape = 's32[1]{0}', space=sflag, size = 0x4, scoped, tag = 'scoped memory for gmu_forward.1']
    #allocation5 [shape = 'u8[1024]{0}', space=vmem, size = 0x400, scoped, tag = 'output window, operand 0, single buffered']
    %11 = vsyncpa [#allocation3], 0
    %12 = vsyncpa [#allocation4], 0
    // Predicated region
    $region2: #{gmu_forward.1} parent=1 // pred_check
      _
    $region3: #{gmu_forward.1} parent=1 // pred_check_branch
      %14 = sbr.rel (0) target = $region5
    $region4: #{gmu_forward.1} parent=1 // pred_region
      %s16 = ssub.s32 256, 256
      %17 = vsyncadd [#allocation3], %s16
      %s18 = sshll.u32 [#allocation2], 4
      %s19 = int_to_ptr.vmem [resolvable:$true] %s18
      %24 = dma.hbm_to_vmem [thread:$0]  %s0, 256, %s19, [#allocation3], 128, 128, 8
    $region5: #{gmu_forward.1} parent=1 // pred_fallthru
      _
    // Predicated region
    $region6: #{gmu_forward.1} parent=1 // pred_check
      _
    $region7: #{gmu_forward.1} parent=1 // pred_check_branch
      %26 = sbr.rel (0) target = $region9
    $region8: #{gmu_forward.1} parent=1 // pred_region
      _
    $region9: #{gmu_forward.1} parent=1 // pred_fallthru
      _
    // Predicated region
    $region10: #{gmu_forward.1} parent=1 // pred_check
      _
    $region11: #{gmu_forward.1} parent=1 // pred_check_branch
      %28 = sbr.rel (0) target = $region13
    $region12: #{gmu_forward.1} parent=1 // pred_region
      _
    $region13: #{gmu_forward.1} parent=1 // pred_fallthru
      _
    // Predicated region
    $region14: #{gmu_forward.1} parent=1 // pred_check
      _
    $region15: #{gmu_forward.1} parent=1 // pred_check_branch
      %30 = sbr.rel (0) target = $region17
    $region16: #{gmu_forward.1} parent=1 // pred_region
      _
    $region17: #{gmu_forward.1} parent=1 // pred_fallthru
      _
    // Predicated region
    $region18: #{gmu_forward.1} parent=1 // pred_check
      _
    $region19: #{gmu_forward.1} parent=1 // pred_check_branch
      %32 = sbr.rel (0) target = $region21
    $region20: #{gmu_forward.1} parent=1 // pred_region
      _
    $region21: #{gmu_forward.1} parent=1 // pred_fallthru
      _
    // Predicated region
    $region22: #{gmu_forward.1} parent=1 // pred_check
      _
    $region23: #{gmu_forward.1} parent=1 // pred_check_branch
      %34 = sbr.rel (0) target = $region25
    $region24: #{gmu_forward.1} parent=1 // pred_region
      _
    $region25: #{gmu_forward.1} parent=1 // pred_fallthru
      _
    // Predicated region
    $region26: #{gmu_forward.1} parent=1 // pred_check
      _
    $region27: #{gmu_forward.1} parent=1 // pred_check_branch
      %36 = sbr.rel (0) target = $region29
    $region28: #{gmu_forward.1} parent=1 // pred_region
      %37 = dma.done [#allocation3], 256
    $region29: #{gmu_forward.1} parent=1 // pred_fallthru
      _
    %v38 = vld [vmem:[#allocation2] sm:$0xff]
    %v39 = vld [vmem:[#allocation2 + $0x8] sm:$0xff]
    %v40 = vld [vmem:[%s1] sm:$0x1]
    %v42 = vlaneseq
    %v43 = vshrl.u32 %v42, 7
    %v44 = vsub.s32 0, %v43
    %v45 = vrot.slane %v40, %v44
    %v47 = vmul.f32 %v38, %v45
    %v48 = vmul.f32 %v39, %v45
    %vm49 = vcmask 523264
    %v50 = vsel %vm49, %v47, 0.0
    %51 = vadd.xlane.f32.xlu0 %v50
    %v52 = vpop.xlane.xlu0 %51
    %v53 = vsel %vm49, %v48, 0.0
    %54 = vadd.xlane.f32.xlu0 %v53
    %v55 = vpop.xlane.xlu0 %54
    %v58 = vlaneseq
    %v59 = vand.u32 %v58, 127
    %v60 = vlaneseq
    %v61 = vshrl.u32 %v60, 7
    %v62 = vsub.s32 %v59, %v61
    %v63 = vrot.slane %v52, %v62
    %v64 = vlaneseq
    %v65 = vshrl.u32 %v64, 7
    %v66 = vsub.s32 %v59, %v65
    %v67 = vrot.slane %v55, %v66
    %vm68 = vcmask 1041409
    %v69 = vsel %vm68, %v67, %v63
    %vm71 = vcmask 58368
    %v72 = vsel %vm71, %v69, -inf
    %73 = vmax.xlane.f32.xlu0 %v72
    %v74 = vpop.xlane.xlu0 %73
    %v76 = vlaneseq
    %v77 = vshrl.u32 %v76, 7
    %v78 = vsub.s32 0, %v77
    %v79 = vrot.slane %v74, %v78
    %v80 = vlaneseq
    %v81 = vshrl.u32 %v80, 7
    %v82 = vsub.s32 1, %v81
    %v83 = vrot.slane %v74, %v82
    %v86 = vsub.f32 %v52, %v79
    %v87 = vsub.f32 %v55, %v83
    %v88 = vmul.f32 %v86, 1.442695
    %v89 = vpow.pop %v88
    %v90 = vmul.f32 %v87, 1.442695
    %v91 = vpow.pop %v90
    %94 = vset.pattern.permute.xlu0 0
    %95 = vperm.xlu0 %94, %v89
    %v96 = vpop.permute.xlu0 %95
    %97 = vset.pattern.permute.xlu0 0
    %98 = vperm.xlu0 %97, %v91
    %v99 = vpop.permute.xlu0 %98
    %v100 = vlaneseq
    %v101 = vshrl.u32 %v100, 7
    %v102 = vsub.s32 %v59, %v101
    %v103 = vrot.slane %v96, %v102
    %v104 = vlaneseq
    %v105 = vshrl.u32 %v104, 7
    %v106 = vsub.s32 %v59, %v105
    %v107 = vrot.slane %v99, %v106
    %v108 = vsel %vm68, %v107, %v103
    %v110 = vsel %vm71, %v108, 0.0
    %111 = vadd.xlane.f32.xlu0 %v110
    %v112 = vpop.xlane.xlu0 %111
    %v113 = vrcp.pop %v112
    %v115 = vlaneseq
    %v116 = vshrl.u32 %v115, 7
    %v117 = vsub.s32 0, %v116
    %v118 = vrot.slane %v113, %v117
    %v119 = vlaneseq
    %v120 = vshrl.u32 %v119, 7
    %v121 = vsub.s32 1, %v120
    %v122 = vrot.slane %v113, %v121
    %v125 = vmul.f32 %v89, %v118
    %v126 = vmul.f32 %v91, %v122
    %v127 = vtanh.pop %v38
    %v128 = vtanh.pop %v39
    %130 = vset.pattern.permute.xlu0 0
    %131 = vperm.xlu0 %130, %v125
    %v132 = vpop.permute.xlu0 %131
    %135 = vset.pattern.permute.xlu0 0
    %136 = vperm.xlu0 %135, %v126
    %v137 = vpop.permute.xlu0 %136
    %v139 = vmul.f32 %v127, %v132
    %v140 = vmul.f32 %v128, %v137
    %v141 = vsel %vm49, %v139, 0.0
    %v142 = vrot.slane %v141, 4
    %v143 = vadd.f32 %v141, %v142
    %v144 = vrot.slane %v143, 2
    %v145 = vadd.f32 %v143, %v144
    %v146 = vrot.slane %v145, 1
    %v147 = vadd.f32 %v145, %v146
    %v148 = vsel %vm49, %v140, 0.0
    %v149 = vrot.slane %v148, 4
    %v150 = vadd.f32 %v148, %v149
    %v151 = vrot.slane %v150, 2
    %v152 = vadd.f32 %v150, %v151
    %v153 = vrot.slane %v152, 1
    %v154 = vadd.f32 %v152, %v153
    %v155 = vld [vmem:[%s2] sm:$0xff]
    %v156 = vld [vmem:[%s2 + $0x8] sm:$0xff]
    %v157 = vld [vmem:[%s2 + $0x10] sm:$0xff]
    %v158 = vld [vmem:[%s2 + $0x18] sm:$0xff]
    %v159 = vld [vmem:[%s2 + $0x20] sm:$0xff]
    %v160 = vld [vmem:[%s2 + $0x28] sm:$0xff]
    %v161 = vld [vmem:[%s2 + $0x30] sm:$0xff]
    %v162 = vld [vmem:[%s2 + $0x38] sm:$0xff]
    %v163 = vld [vmem:[%s3] sm:$0x1]
    %v164 = vld [vmem:[%s4] sm:$0xff]
    %v165 = vld [vmem:[%s4 + $0x8] sm:$0xff]
    %v166 = vld [vmem:[%s4 + $0x10] sm:$0xff]
    %v167 = vld [vmem:[%s4 + $0x18] sm:$0xff]
    %v168 = vld [vmem:[%s4 + $0x20] sm:$0xff]
    %v169 = vld [vmem:[%s4 + $0x28] sm:$0xff]
    %v170 = vld [vmem:[%s4 + $0x30] sm:$0xff]
    %v171 = vld [vmem:[%s4 + $0x38] sm:$0xff]
    %v172 = vld [vmem:[%s5] sm:$0x1]
    %v174 = vlaneseq
    %v175 = vshrl.u32 %v174, 7
    %v176 = vsub.s32 0, %v175
    %v177 = vrot.slane %v163, %v176
    %v181 = vsel %vm68, %v154, %v147
    %v182 = vsel %vm49, %v181, 0
    %184 = vmatprep.subr.mxu0 0.0
    %185 = vmatpush1.msra.mxu0 %v155
    %186 = vmatprep.subr.mxu0 0.0
    %187 = vmatpush1.msra.mxu0 %v156
    %188 = vmatprep.subr.mxu0 0.0
    %189 = vmatpush1.msra.mxu0 %v157
    %190 = vmatprep.subr.mxu0 0.0
    %191 = vmatpush1.msra.mxu0 %v158
    %192 = vmatprep.subr.mxu0 0.0
    %193 = vmatpush1.msra.mxu0 %v159
    %194 = vmatprep.subr.mxu0 0.0
    %195 = vmatpush1.msra.mxu0 %v160
    %196 = vmatprep.subr.mxu0 0.0
    %197 = vmatpush1.msra.mxu0 %v161
    %198 = vmatprep.subr.mxu0 0.0
    %199 = vmatpush1.msra.mxu0 %v162
    %200 = vmatprep.subr.mxu0 0.0
    %201 = vmatpush1.msra.mxu0 0.0
    %202 = vmatprep.subr.mxu0 0.0
    %203 = vmatpush1.msra.mxu0 0.0
    %204 = vmatprep.subr.mxu0 0.0
    %205 = vmatpush1.msra.mxu0 0.0
    %206 = vmatprep.subr.mxu0 0.0
    %207 = vmatpush1.msra.mxu0 0.0
    %208 = vmatprep.subr.mxu0 0.0
    %209 = vmatpush1.msra.mxu0 0.0
    %210 = vmatprep.subr.mxu0 0.0
    %211 = vmatpush1.msra.mxu0 0.0
    %212 = vmatprep.subr.mxu0 0.0
    %213 = vmatpush1.msra.mxu0 0.0
    %214 = vmatprep.subr.mxu0 0.0
    %215 = vmatpush1.msra.mxu0 0.0
    %216 = vmatprep.subr.mxu0 0.0
    %217 = vmatpush1.msra.mxu0 0.0
    %218 = vmatprep.subr.mxu0 0.0
    %219 = vmatpush1.msra.mxu0 0.0
    %220 = vmatprep.subr.mxu0 0.0
    %221 = vmatpush1.msra.mxu0 0.0
    %222 = vmatprep.subr.mxu0 0.0
    %223 = vmatpush1.msra.mxu0 0.0
    %224 = vmatprep.subr.mxu0 0.0
    %225 = vmatpush1.msra.mxu0 0.0
    %226 = vmatprep.subr.mxu0 0.0
    %227 = vmatpush1.msra.mxu0 0.0
    %228 = vmatprep.subr.mxu0 0.0
    %229 = vmatpush1.msra.mxu0 0.0
    %230 = vmatprep.subr.mxu0 0.0
    %231 = vmatpush1.msra.mxu0 0.0
    %232 = vmatprep.subr.mxu0 0.0
    %233 = vmatpush1.msra.mxu0 0.0
    %234 = vmatprep.subr.mxu0 0.0
    %235 = vmatpush1.msra.mxu0 0.0
    %236 = vmatprep.subr.mxu0 0.0
    %237 = vmatpush1.msra.mxu0 0.0
    %238 = vmatprep.subr.mxu0 0.0
    %239 = vmatpush1.msra.mxu0 0.0
    %240 = vmatprep.subr.mxu0 0.0
    %241 = vmatpush1.msra.mxu0 0.0
    %242 = vmatprep.subr.mxu0 0.0
    %243 = vmatpush1.msra.mxu0 0.0
    %244 = vmatprep.subr.mxu0 0.0
    %245 = vmatpush1.msra.mxu0 0.0
    %246 = vmatprep.subr.mxu0 0.0
    %247 = vmatpush1.msra.mxu0 0.0
    %248 = vmatprep.mubr.f32.mxu0 0.0
    %249 = vmatmul.mubr.f32.gmra.mrb[0].mxu0 %v182
    %v250 = vpop.f32.mrb[0].mxu0
    %v251 = vadd.f32 %v177, %v250
    %v252 = vpop.f32.mrb[0].mxu0
    %253 = vdwg.mxu0
    %vm254 = vcmp.gt.f32.partialorder %v251, 0.0
    %v255 = vmul.f32 %v251, 0.01
    %v256 = vsel %vm254, %v251, %v255
    %v258 = vlaneseq
    %v259 = vshrl.u32 %v258, 7
    %v260 = vsub.s32 0, %v259
    %v261 = vrot.slane %v172, %v260
    %v264 = vsel %vm49, %v256, 0
    %266 = vmatprep.subr.mxu0 0.0
    %267 = vmatpush1.msra.mxu0 %v164
    %268 = vmatprep.subr.mxu0 0.0
    %269 = vmatpush1.msra.mxu0 %v165
    %270 = vmatprep.subr.mxu0 0.0
    %271 = vmatpush1.msra.mxu0 %v166
    %272 = vmatprep.subr.mxu0 0.0
    %273 = vmatpush1.msra.mxu0 %v167
    %274 = vmatprep.subr.mxu0 0.0
    %275 = vmatpush1.msra.mxu0 %v168
    %276 = vmatprep.subr.mxu0 0.0
    %277 = vmatpush1.msra.mxu0 %v169
    %278 = vmatprep.subr.mxu0 0.0
    %279 = vmatpush1.msra.mxu0 %v170
    %280 = vmatprep.subr.mxu0 0.0
    %281 = vmatpush1.msra.mxu0 %v171
    %282 = vmatprep.subr.mxu0 0.0
    %283 = vmatpush1.msra.mxu0 0.0
    %284 = vmatprep.subr.mxu0 0.0
    %285 = vmatpush1.msra.mxu0 0.0
    %286 = vmatprep.subr.mxu0 0.0
    %287 = vmatpush1.msra.mxu0 0.0
    %288 = vmatprep.subr.mxu0 0.0
    %289 = vmatpush1.msra.mxu0 0.0
    %290 = vmatprep.subr.mxu0 0.0
    %291 = vmatpush1.msra.mxu0 0.0
    %292 = vmatprep.subr.mxu0 0.0
    %293 = vmatpush1.msra.mxu0 0.0
    %294 = vmatprep.subr.mxu0 0.0
    %295 = vmatpush1.msra.mxu0 0.0
    %296 = vmatprep.subr.mxu0 0.0
    %297 = vmatpush1.msra.mxu0 0.0
    %298 = vmatprep.subr.mxu0 0.0
    %299 = vmatpush1.msra.mxu0 0.0
    %300 = vmatprep.subr.mxu0 0.0
    %301 = vmatpush1.msra.mxu0 0.0
    %302 = vmatprep.subr.mxu0 0.0
    %303 = vmatpush1.msra.mxu0 0.0
    %304 = vmatprep.subr.mxu0 0.0
    %305 = vmatpush1.msra.mxu0 0.0
    %306 = vmatprep.subr.mxu0 0.0
    %307 = vmatpush1.msra.mxu0 0.0
    %308 = vmatprep.subr.mxu0 0.0
    %309 = vmatpush1.msra.mxu0 0.0
    %310 = vmatprep.subr.mxu0 0.0
    %311 = vmatpush1.msra.mxu0 0.0
    %312 = vmatprep.subr.mxu0 0.0
    %313 = vmatpush1.msra.mxu0 0.0
    %314 = vmatprep.subr.mxu0 0.0
    %315 = vmatpush1.msra.mxu0 0.0
    %316 = vmatprep.subr.mxu0 0.0
    %317 = vmatpush1.msra.mxu0 0.0
    %318 = vmatprep.subr.mxu0 0.0
    %319 = vmatpush1.msra.mxu0 0.0
    %320 = vmatprep.subr.mxu0 0.0
    %321 = vmatpush1.msra.mxu0 0.0
    %322 = vmatprep.subr.mxu0 0.0
    %323 = vmatpush1.msra.mxu0 0.0
    %324 = vmatprep.subr.mxu0 0.0
    %325 = vmatpush1.msra.mxu0 0.0
    %326 = vmatprep.subr.mxu0 0.0
    %327 = vmatpush1.msra.mxu0 0.0
    %328 = vmatprep.subr.mxu0 0.0
    %329 = vmatpush1.msra.mxu0 0.0
    %330 = vmatprep.mubr.f32.mxu0 0.0
    %331 = vmatmul.mubr.f32.gmra.mrb[0].mxu0 %v264
    %v332 = vpop.f32.mrb[0].mxu0
    %v333 = vadd.f32 %v261, %v332
    %v334 = vpop.f32.mrb[0].mxu0
    %335 = vdwg.mxu0
    %vm336 = vcmask 9216
    %337 = vst.msk [vmem:[#allocation5] sm:$0x3] %vm336, %v333
    // Predicated region
    $region30: #{gmu_forward.1} parent=1 // pred_check
      _
    $region31: #{gmu_forward.1} parent=1 // pred_check_branch
      %339 = sbr.rel (0) target = $region33
    $region32: #{gmu_forward.1} parent=1 // pred_region
      %s341 = ssub.s32 32, 32
      %342 = vsyncadd [#allocation4], %s341
      %s344 = sshll.u32 [#allocation5], 4
      %s345 = int_to_ptr.vmem [resolvable:$true] %s344
      %347 = dma.vmem_to_hbm [thread:$0]  %s345, 32, %s6, [#allocation4]
    $region33: #{gmu_forward.1} parent=1 // pred_fallthru
      _
    // Predicated region
    $region34: #{gmu_forward.1} parent=1 // pred_check
      _
    $region35: #{gmu_forward.1} parent=1 // pred_check_branch
      %349 = sbr.rel (0) target = $region37
    $region36: #{gmu_forward.1} parent=1 // pred_region
      %350 = dma.done [#allocation4], 32
    $region37: #{gmu_forward.1} parent=1 // pred_fallthru
      _
    %351 = vsyncpa [#allocation3], 1
    %352 = vsyncpa [#allocation4], 1

</llo_original>
